<compile_context>
chip_gen: v6e
topology: v6e:2x2x1
jax: 0.10.0
libtpu: 0.0.40
codegen_flags: <defaults>
</compile_context>

<pallas_src>
import math
import jax
import jax.numpy as jnp
from jax.experimental import pallas as pl
from jax.experimental.pallas import tpu as pltpu

# ---- config mirroring args ---------------------------------------------------
VOCAB = 15220
WORD_DIM = 32           # args.word_dim
FILTERS = (3, 4, 5)     # args.filters (conv kernel widths)
FILTER_NUM = (8, 8, 8)  # args.filter_num
CLASS_SIZE = 4          # args.class_size
DROPOUT_P = 0.5         # args.dropout (inference mode -> identity)
SEQ_LEN = 16
BATCH = 2

K_MAX = max(FILTERS)                                      # 5
F_TOTAL = sum(FILTER_NUM)                                 # 24
T_PAD = ((SEQ_LEN - min(FILTERS) + 1 + 7) // 8) * 8       # conv positions, padded to 8-multiple -> 16
L_PAD = T_PAD + K_MAX - 1                                 # padded seq length for im2col windows -> 20
KD = K_MAX * WORD_DIM                                     # fused contraction dim -> 160


def cnn_kernel(x_ref, w_ref, b_ref, mask_ref, fcw_ref, fcb_ref, out_ref):
    """Fused forward, all operands resident in VMEM.

    x_ref    : [B*T_PAD, K_MAX*D] f32  im2col'd embeddings (shared by all branches)
    w_ref    : [K_MAX*D, F_TOTAL] f32  tap-zero-padded, channel-concatenated conv weights
    b_ref    : [1, F_TOTAL]       f32  conv biases
    mask_ref : [B*T_PAD, F_TOTAL] f32  1.0 on valid conv positions for each branch, else 0.0
    fcw_ref  : [F_TOTAL, C]       f32
    fcb_ref  : [1, C]             f32
    out_ref  : [B, C]             f32
    """
    # One MXU matmul covers every conv branch and the whole batch.
    acc = jnp.dot(x_ref[...], w_ref[...], preferred_element_type=jnp.float32)
    acc = jnp.maximum(acc + b_ref[...], 0.0) * mask_ref[...]   # bias + ReLU + invalid-pos mask

    # Per-batch-item max-pool over time. Rows are laid out [b*T_PAD + t] with
    # T_PAD a multiple of 8, so the slices are sublane-aligned.
    pooled = [jnp.max(acc[b * T_PAD:(b + 1) * T_PAD, :], axis=0, keepdims=True)
              for b in range(BATCH)]
    feat = jnp.concatenate(pooled, axis=0)                     # [B, F_TOTAL]

    # TODO(synk): F.dropout with training=True needs RNG (pltpu.prng_*); eval mode -> identity.
    logits = jnp.dot(feat, fcw_ref[...],
                     preferred_element_type=jnp.float32) + fcb_ref[...]      # [B, C]
    m = jnp.max(logits, axis=1, keepdims=True)
    e = jnp.exp(logits - m)
    denom = jnp.sum(e, axis=1, keepdims=True)
    out_ref[...] = e * pl.reciprocal(denom, approx=True)       # softmax(dim=1)


def _fuse_conv_params(conv_ws, conv_bs):
    """Zero-pad each branch's taps to K_MAX and concat along output channels."""
    w_parts = []
    for k, f, w in zip(FILTERS, FILTER_NUM, conv_ws):
        w_pad = jnp.pad(w, ((0, K_MAX - k), (0, 0), (0, 0)))   # [K_MAX, D, F_i]
        w_parts.append(w_pad.reshape(K_MAX * WORD_DIM, f))     # row index = j*D + c
    w_fused = jnp.concatenate(w_parts, axis=1)                 # [K_MAX*D, F_TOTAL]
    b_fused = jnp.concatenate(conv_bs, axis=1)                 # [1, F_TOTAL]
    return w_fused, b_fused


def _valid_mask():
    """mask[b*T_PAD + t, col] = 1.0 iff t is a valid conv position for col's branch."""
    l_out_per_col = []
    for k, f in zip(FILTERS, FILTER_NUM):
        l_out_per_col += [SEQ_LEN - k + 1] * f
    limits = jnp.asarray(l_out_per_col, jnp.int32)[None, :]    # [1, F_TOTAL]
    t_idx = jnp.arange(T_PAD, dtype=jnp.int32)[:, None]        # [T_PAD, 1]
    mask = (t_idx < limits).astype(jnp.float32)                # [T_PAD, F_TOTAL]
    return jnp.tile(mask, (BATCH, 1))                          # [B*T_PAD, F_TOTAL]


@jax.jit
def cnn_forward(tokens, params):
    emb_table, conv_ws, conv_bs, fc_w, fc_b = params

    # Embedding gather + im2col stay fused into the same XLA program as the
    # pallas_call -> one dispatch, no extra HBM round trip for `emb`.
    emb = jnp.take(emb_table, tokens, axis=0).astype(jnp.float32)    # [B, L, D]
    emb = jnp.pad(emb, ((0, 0), (0, L_PAD - SEQ_LEN), (0, 0)))       # [B, L_PAD, D]
    windows = jnp.stack([emb[:, j:j + T_PAD, :] for j in range(K_MAX)], axis=2)  # [B,T_PAD,K_MAX,D]
    x = windows.reshape(BATCH * T_PAD, KD)                           # [B*T_PAD, K_MAX*D]

    w_fused, b_fused = _fuse_conv_params(conv_ws, conv_bs)
    mask = _valid_mask()

    vmem = pl.BlockSpec(memory_space=pltpu.MemorySpace.VMEM)
    out = pl.pallas_call(
        cnn_kernel,
        out_shape=jax.ShapeDtypeStruct((BATCH, CLASS_SIZE), jnp.float32),
        in_specs=[vmem] * 6,
        out_specs=vmem,
    )(x, w_fused, b_fused, mask, fc_w, fc_b)
    return out


def cnn_reference(tokens, params):
    """Plain-JAX mirror of the PyTorch forward (eval mode)."""
    emb_table, conv_ws, conv_bs, fc_w, fc_b = params
    emb = jnp.take(emb_table, tokens, axis=0).astype(jnp.float32)    # [B, L, D]
    feats = []
    for i, k in enumerate(FILTERS):
        l_out = SEQ_LEN - k + 1
        acc = jnp.zeros((emb.shape[0], l_out, FILTER_NUM[i]), jnp.float32)
        for j in range(k):
            acc += jnp.einsum('bld,df->blf', emb[:, j:j + l_out, :], conv_ws[i][j])
        acc = jax.nn.relu(acc + conv_bs[i])
        feats.append(jnp.max(acc, axis=1))
    feat = jnp.concatenate(feats, axis=1)
    logits = feat @ fc_w + fc_b
    return jax.nn.softmax(logits, axis=1)


def init_params(key):
    n = len(FILTERS)
    keys = jax.random.split(key, 2 + 2 * n + 2)
    emb_table = jax.random.normal(keys[0], (VOCAB, WORD_DIM), jnp.float32) * 0.1
    conv_ws, conv_bs = [], []
    for i, k in enumerate(FILTERS):
        bound = 1.0 / math.sqrt(WORD_DIM * k)
        conv_ws.append(jax.random.uniform(keys[1 + 2 * i], (k, WORD_DIM, FILTER_NUM[i]),
                                          jnp.float32, -bound, bound))
        conv_bs.append(jax.random.uniform(keys[2 + 2 * i], (1, FILTER_NUM[i]),
                                          jnp.float32, -bound, bound))
    total_f = sum(FILTER_NUM)
    bound = 1.0 / math.sqrt(total_f)
    fc_w = jax.random.uniform(keys[-2], (total_f, CLASS_SIZE), jnp.float32, -bound, bound)
    fc_b = jax.random.uniform(keys[-1], (1, CLASS_SIZE), jnp.float32, -bound, bound)
    return emb_table, conv_ws, conv_bs, fc_w, fc_b


if __name__ == "__main__":
    key = jax.random.PRNGKey(0)
    k_tok, k_par = jax.random.split(key)
    tokens = jax.random.randint(k_tok, (BATCH, SEQ_LEN), 0, VOCAB, dtype=jnp.int32)
    params = init_params(k_par)

    out = jax.block_until_ready(cnn_forward(tokens, params))
    ref = jax.block_until_ready(cnn_reference(tokens, params))

    assert out.shape == (BATCH, CLASS_SIZE)
    # Tolerance accommodates the EUP approximate reciprocal used for the
    # softmax normalization; everything else is exact f32.
    assert bool(jnp.allclose(out, ref, atol=2e-3, rtol=2e-3))
    assert bool(jnp.allclose(jnp.sum(out, axis=1), jnp.ones((BATCH,)), atol=5e-3))
    print("KERNEL_OK")
</pallas_src>

<mosaic_0001>
module attributes {stable_mosaic.version = 11 : i64} {
  func.func @cnn_kernel(%arg0: memref<32x160xf32, #tpu.memory_space<vmem>>, %arg1: memref<160x24xf32, #tpu.memory_space<vmem>>, %arg2: memref<1x24xf32, #tpu.memory_space<vmem>>, %arg3: memref<32x24xf32, #tpu.memory_space<vmem>>, %arg4: memref<24x4xf32, #tpu.memory_space<vmem>>, %arg5: memref<1x4xf32, #tpu.memory_space<vmem>>, %arg6: memref<2x4xf32, #tpu.memory_space<vmem>>) attributes {dimension_semantics = [], scalar_prefetch = 0 : i64, scratch_operands = 0 : i64, tpu.core_type = #tpu.core_type<tc>} {
    %c0 = arith.constant 0 : index
    %c0_0 = arith.constant 0 : index
    %0 = vector.load %arg0[%c0, %c0_0] : memref<32x160xf32, #tpu.memory_space<vmem>>, vector<32x160xf32>
    %c0_1 = arith.constant 0 : index
    %c0_2 = arith.constant 0 : index
    %1 = vector.load %arg1[%c0_1, %c0_2] : memref<160x24xf32, #tpu.memory_space<vmem>>, vector<160x24xf32>
    %cst = arith.constant dense<0.000000e+00> : vector<32x24xf32>
    %2 = tpu.matmul %0, %1, %cst {dimension_numbers = #tpu.dot_dimension_numbers<[1], [0], [0], [1], [0, 0, 1, 1], [], []>} : vector<32x160xf32>, vector<160x24xf32>, vector<32x24xf32> -> vector<32x24xf32>
    %c0_3 = arith.constant 0 : index
    %c0_4 = arith.constant 0 : index
    %3 = vector.load %arg2[%c0_3, %c0_4] : memref<1x24xf32, #tpu.memory_space<vmem>>, vector<1x24xf32>
    %4 = vector.broadcast %3 : vector<1x24xf32> to vector<32x24xf32>
    %5 = arith.addf %2, %4 : vector<32x24xf32>
    %cst_5 = arith.constant 0.000000e+00 : f32
    %6 = vector.broadcast %cst_5 : f32 to vector<32x24xf32>
    %7 = arith.maximumf %5, %6 : vector<32x24xf32>
    %c0_6 = arith.constant 0 : index
    %c0_7 = arith.constant 0 : index
    %8 = vector.load %arg3[%c0_6, %c0_7] : memref<32x24xf32, #tpu.memory_space<vmem>>, vector<32x24xf32>
    %9 = arith.mulf %7, %8 : vector<32x24xf32>
    %10 = vector.extract_strided_slice %9 {offsets = [0, 0], sizes = [16, 24], strides = [1, 1]} : vector<32x24xf32> to vector<16x24xf32>
    %cst_8 = arith.constant dense<0xFF800000> : vector<24xf32>
    %11 = vector.multi_reduction <maximumf>, %10, %cst_8 [0] : vector<16x24xf32> to vector<24xf32>
    %12 = vector.shape_cast %11 : vector<24xf32> to vector<1x24xf32>
    %13 = vector.extract_strided_slice %9 {offsets = [16, 0], sizes = [16, 24], strides = [1, 1]} : vector<32x24xf32> to vector<16x24xf32>
    %cst_9 = arith.constant dense<0xFF800000> : vector<24xf32>
    %14 = vector.multi_reduction <maximumf>, %13, %cst_9 [0] : vector<16x24xf32> to vector<24xf32>
    %15 = vector.shape_cast %14 : vector<24xf32> to vector<1x24xf32>
    %16 = tpu.concatenate %12, %15 in 0 : vector<1x24xf32>, vector<1x24xf32> -> vector<2x24xf32>
    %c0_10 = arith.constant 0 : index
    %c0_11 = arith.constant 0 : index
    %17 = vector.load %arg4[%c0_10, %c0_11] : memref<24x4xf32, #tpu.memory_space<vmem>>, vector<24x4xf32>
    %cst_12 = arith.constant dense<0.000000e+00> : vector<2x4xf32>
    %18 = tpu.matmul %16, %17, %cst_12 {dimension_numbers = #tpu.dot_dimension_numbers<[1], [0], [0], [1], [0, 0, 1, 1], [], []>} : vector<2x24xf32>, vector<24x4xf32>, vector<2x4xf32> -> vector<2x4xf32>
    %c0_13 = arith.constant 0 : index
    %c0_14 = arith.constant 0 : index
    %19 = vector.load %arg5[%c0_13, %c0_14] : memref<1x4xf32, #tpu.memory_space<vmem>>, vector<1x4xf32>
    %20 = vector.broadcast %19 : vector<1x4xf32> to vector<2x4xf32>
    %21 = arith.addf %18, %20 : vector<2x4xf32>
    %cst_15 = arith.constant dense<0xFF800000> : vector<2xf32>
    %22 = vector.multi_reduction <maximumf>, %21, %cst_15 [1] : vector<2x4xf32> to vector<2xf32>
    %23 = vector.shape_cast %22 : vector<2xf32> to vector<2x1xf32>
    %24 = vector.broadcast %23 : vector<2x1xf32> to vector<2x4xf32>
    %25 = arith.subf %21, %24 : vector<2x4xf32>
    %26 = math.exp %25 : vector<2x4xf32>
    %cst_16 = arith.constant dense<0.000000e+00> : vector<2xf32>
    %27 = vector.multi_reduction <add>, %26, %cst_16 [1] : vector<2x4xf32> to vector<2xf32>
    %28 = vector.shape_cast %27 : vector<2xf32> to vector<2x1xf32>
    %29 = tpu.reciprocal %28 {approx = true} : vector<2x1xf32> -> vector<2x1xf32>
    %30 = vector.broadcast %29 : vector<2x1xf32> to vector<2x4xf32>
    %31 = arith.mulf %26, %30 : vector<2x4xf32>
    %c0_17 = arith.constant 0 : index
    %c0_18 = arith.constant 0 : index
    %32 = vector.load %arg6[%c0_17, %c0_18] : memref<2x4xf32, #tpu.memory_space<vmem>>, vector<2x4xf32>
    tpu.vector_store %arg6[%c0_17, %c0_18], %31 {strides = array<i32>} : memref<2x4xf32, #tpu.memory_space<vmem>>, vector<2x4xf32>,
    return
  }
}

</mosaic_0001>

<llo_original>
// kernel: cnn_forward.1
$region0: #{cnn_forward.1}
  #allocation0 [shape = 'u32[]', space=smem, size = 0x4, offset = 0x4, fixed_abs, tag = 'smem constant byte address 0x4 - core index']
  #allocation1 [shape = 'u32[144,128]{1,0:T(1,128)}', space=vmem, size = 0x12000, scoped, tag = 'internal scratch']
  %s0 = inlined_call_operand.vmem [shape: f32[32,160], index: 0, kind: input, shape index: {}]
  %s1 = inlined_call_operand.vmem [shape: f32[160,24], index: 1, kind: input, shape index: {}]
  %s2 = inlined_call_operand.vmem [shape: f32[1,24], index: 2, kind: input, shape index: {}]
  %s3 = inlined_call_operand.vmem [shape: f32[32,24], index: 3, kind: input, shape index: {}]
  %s4 = inlined_call_operand.vmem [shape: f32[24,4], index: 4, kind: input, shape index: {}]
  %s5 = inlined_call_operand.vmem [shape: f32[1,4], index: 5, kind: input, shape index: {}]
  %s6 = inlined_call_operand.hbm [shape: f32[2,4], index: 6, kind: output, shape index: {}]
  %s7 = sld [smem:[#allocation0]]
  $region34: #{cnn_forward.1} parent=0
    _
  %s9 = ssub.s32 1, %s7
  %s10 = scalar_select 0, %s9, %s7
  $region1: #{cnn_forward.1} parent=0
    #allocation2 [shape = 'u8[1024]{0}', space=vmem, size = 0x400, scoped, tag = 'output window, operand 0, single buffered']
    #allocation3 [shape = 's32[1]{0}', space=sflag, size = 0x4, scoped, tag = 'scoped memory for cnn_forward.1']
    %11 = vsyncpa [#allocation3], 0
    // Predicated region
    $region2: #{cnn_forward.1} parent=1 // pred_check
      _
    $region3: #{cnn_forward.1} parent=1 // pred_check_branch
      %13 = sbr.rel (0) target = $region5
    $region4: #{cnn_forward.1} parent=1 // pred_region
      _
    $region5: #{cnn_forward.1} parent=1 // pred_fallthru
      _
    // Predicated region
    $region6: #{cnn_forward.1} parent=1 // pred_check
      _
    $region7: #{cnn_forward.1} parent=1 // pred_check_branch
      %15 = sbr.rel (0) target = $region9
    $region8: #{cnn_forward.1} parent=1 // pred_region
      _
    $region9: #{cnn_forward.1} parent=1 // pred_fallthru
      _
    // Predicated region
    $region10: #{cnn_forward.1} parent=1 // pred_check
      _
    $region11: #{cnn_forward.1} parent=1 // pred_check_branch
      %17 = sbr.rel (0) target = $region13
    $region12: #{cnn_forward.1} parent=1 // pred_region
      _
    $region13: #{cnn_forward.1} parent=1 // pred_fallthru
      _
    // Predicated region
    $region14: #{cnn_forward.1} parent=1 // pred_check
      _
    $region15: #{cnn_forward.1} parent=1 // pred_check_branch
      %19 = sbr.rel (0) target = $region17
    $region16: #{cnn_forward.1} parent=1 // pred_region
      _
    $region17: #{cnn_forward.1} parent=1 // pred_fallthru
      _
    // Predicated region
    $region18: #{cnn_forward.1} parent=1 // pred_check
      _
    $region19: #{cnn_forward.1} parent=1 // pred_check_branch
      %21 = sbr.rel (0) target = $region21
    $region20: #{cnn_forward.1} parent=1 // pred_region
      _
    $region21: #{cnn_forward.1} parent=1 // pred_fallthru
      _
    // Predicated region
    $region22: #{cnn_forward.1} parent=1 // pred_check
      _
    $region23: #{cnn_forward.1} parent=1 // pred_check_branch
      %23 = sbr.rel (0) target = $region25
    $region24: #{cnn_forward.1} parent=1 // pred_region
      _
    $region25: #{cnn_forward.1} parent=1 // pred_fallthru
      _
    %v24 = vld [vmem:[%s0] sm:$0xff]
    %v25 = vld [vmem:[%s0 + $0x8] sm:$0xff]
    %v26 = vld [vmem:[%s0 + $0x10] sm:$0xff]
    %v27 = vld [vmem:[%s0 + $0x18] sm:$0xff]
    %v28 = vld [vmem:[%s0 + $0x20] sm:$0xff]
    %v29 = vld [vmem:[%s0 + $0x28] sm:$0xff]
    %v30 = vld [vmem:[%s0 + $0x30] sm:$0xff]
    %v31 = vld [vmem:[%s0 + $0x38] sm:$0xff]
    %v32 = vld [vmem:[%s1] sm:$0xff]
    %v33 = vld [vmem:[%s1 + $0x8] sm:$0xff]
    %v34 = vld [vmem:[%s1 + $0x10] sm:$0xff]
    %v35 = vld [vmem:[%s1 + $0x18] sm:$0xff]
    %v36 = vld [vmem:[%s1 + $0x20] sm:$0xff]
    %v37 = vld [vmem:[%s1 + $0x28] sm:$0xff]
    %v38 = vld [vmem:[%s1 + $0x30] sm:$0xff]
    %v39 = vld [vmem:[%s1 + $0x38] sm:$0xff]
    %v40 = vld [vmem:[%s1 + $0x40] sm:$0xff]
    %v41 = vld [vmem:[%s1 + $0x48] sm:$0xff]
    %v42 = vld [vmem:[%s1 + $0x50] sm:$0xff]
    %v43 = vld [vmem:[%s1 + $0x58] sm:$0xff]
    %v44 = vld [vmem:[%s1 + $0x60] sm:$0xff]
    %v45 = vld [vmem:[%s1 + $0x68] sm:$0xff]
    %v46 = vld [vmem:[%s1 + $0x70] sm:$0xff]
    %v47 = vld [vmem:[%s1 + $0x78] sm:$0xff]
    %v48 = vld [vmem:[%s1 + $0x80] sm:$0xff]
    %v49 = vld [vmem:[%s1 + $0x88] sm:$0xff]
    %v50 = vld [vmem:[%s1 + $0x90] sm:$0xff]
    %v51 = vld [vmem:[%s1 + $0x98] sm:$0xff]
    %v52 = vld [vmem:[%s2] sm:$0x1]
    %v54 = vlaneseq
    %v55 = vshrl.u32 %v54, 7
    %v56 = vsub.s32 0, %v55
    %v57 = vrot.slane %v52, %v56
    %vm59 = vcmask 261120
    %v61 = vsel %vm59, %v25, 0
    %v64 = vsel %vm59, %v27, 0
    %v67 = vsel %vm59, %v29, 0
    %v70 = vsel %vm59, %v31, 0
    %72 = vmatprep.subr.mxu0 0.0
    %73 = vmatpush1.msra.mxu0 %v47
    %74 = vmatprep.subr.mxu0 0.0
    %75 = vmatpush1.msra.mxu0 %v46
    %76 = vmatprep.subr.mxu0 0.0
    %77 = vmatpush1.msra.mxu0 %v45
    %78 = vmatprep.subr.mxu0 0.0
    %79 = vmatpush1.msra.mxu0 %v44
    %80 = vmatprep.subr.mxu0 0.0
    %81 = vmatpush1.msra.mxu0 %v43
    %82 = vmatprep.subr.mxu0 0.0
    %83 = vmatpush1.msra.mxu0 %v42
    %84 = vmatprep.subr.mxu0 0.0
    %85 = vmatpush1.msra.mxu0 %v41
    %86 = vmatprep.subr.mxu0 0.0
    %87 = vmatpush1.msra.mxu0 %v40
    %88 = vmatprep.subr.mxu0 0.0
    %89 = vmatpush1.msra.mxu0 %v39
    %90 = vmatprep.subr.mxu0 0.0
    %91 = vmatpush1.msra.mxu0 %v38
    %92 = vmatprep.subr.mxu0 0.0
    %93 = vmatpush1.msra.mxu0 %v37
    %94 = vmatprep.subr.mxu0 0.0
    %95 = vmatpush1.msra.mxu0 %v36
    %96 = vmatprep.subr.mxu0 0.0
    %97 = vmatpush1.msra.mxu0 %v35
    %98 = vmatprep.subr.mxu0 0.0
    %99 = vmatpush1.msra.mxu0 %v34
    %100 = vmatprep.subr.mxu0 0.0
    %101 = vmatpush1.msra.mxu0 %v33
    %102 = vmatprep.subr.mxu0 0.0
    %103 = vmatpush1.msra.mxu0 %v32
    %104 = vmatprep.subr.mxu0 0.0
    %105 = vmatpush2.msra.mxu0 0.0
    %106 = vmatprep.subr.mxu0 0.0
    %107 = vmatpush2.msra.mxu0 0.0
    %108 = vmatprep.subr.mxu0 0.0
    %109 = vmatpush2.msra.mxu0 0.0
    %110 = vmatprep.subr.mxu0 0.0
    %111 = vmatpush2.msra.mxu0 0.0
    %112 = vmatprep.subr.mxu0 0.0
    %113 = vmatpush2.msra.mxu0 0.0
    %114 = vmatprep.subr.mxu0 0.0
    %115 = vmatpush2.msra.mxu0 0.0
    %116 = vmatprep.subr.mxu0 0.0
    %117 = vmatpush2.msra.mxu0 0.0
    %118 = vmatprep.subr.mxu0 0.0
    %119 = vmatpush2.msra.mxu0 0.0
    %120 = vmatprep.subr.mxu0 0.0
    %121 = vmatpush2.msra.mxu0 0.0
    %122 = vmatprep.subr.mxu0 0.0
    %123 = vmatpush2.msra.mxu0 0.0
    %124 = vmatprep.subr.mxu0 0.0
    %125 = vmatpush2.msra.mxu0 0.0
    %126 = vmatprep.subr.mxu0 0.0
    %127 = vmatpush2.msra.mxu0 0.0
    %128 = vmatprep.subr.mxu0 0.0
    %129 = vmatpush2.msra.mxu0 %v51
    %130 = vmatprep.subr.mxu0 0.0
    %131 = vmatpush2.msra.mxu0 %v50
    %132 = vmatprep.subr.mxu0 0.0
    %133 = vmatpush2.msra.mxu0 %v49
    %134 = vmatprep.subr.mxu0 0.0
    %135 = vmatpush2.msra.mxu0 %v48
    %136 = vmatprep.mubr.f32.mxu0 %v61
    %137 = vmatmul.mubr.f32.gmra.mxu0 %v24
    %v138 = vpop.f32.mrf.mxu0
    %v139 = vadd.f32 %v57, %v138
    %v140 = vpop.f32.mrf.mxu0
    %141 = vmatprep.mubr.f32.mxu0 %v64
    %142 = vmatmul.mubr.f32.gmra.mxu0 %v26
    %v143 = vpop.f32.mrf.mxu0
    %v144 = vadd.f32 %v57, %v143
    %v145 = vpop.f32.mrf.mxu0
    %146 = vmatprep.mubr.f32.mxu0 %v67
    %147 = vmatmul.mubr.f32.gmra.mxu0 %v28
    %v148 = vpop.f32.mrf.mxu0
    %v149 = vadd.f32 %v57, %v148
    %v150 = vpop.f32.mrf.mxu0
    %151 = vmatprep.mubr.f32.mxu0 %v70
    %152 = vmatmul.mubr.f32.gmra.mxu0 %v30
    %v153 = vpop.f32.mrf.mxu0
    %v154 = vadd.f32 %v57, %v153
    %v155 = vpop.f32.mrf.mxu0
    %156 = vdwg.mxu0
    %v157 = vmax.f32 %v139, 0.0
    %v158 = vmax.f32 %v144, 0.0
    %v159 = vmax.f32 %v149, 0.0
    %v160 = vmax.f32 %v154, 0.0
    %v161 = vld [vmem:[%s3] sm:$0xff]
    %v162 = vld [vmem:[%s3 + $0x8] sm:$0xff]
    %v163 = vld [vmem:[%s3 + $0x10] sm:$0xff]
    %v164 = vld [vmem:[%s3 + $0x18] sm:$0xff]
    %v165 = vmul.f32 %v157, %v161
    %v166 = vmul.f32 %v158, %v162
    %v167 = vmul.f32 %v159, %v163
    %v168 = vmul.f32 %v160, %v164
    %vm169 = vcmask 195584
    %v170 = vsel %vm169, %v165, -inf
    %v171 = vsel %vm169, %v166, -inf
    %v172 = vmax.f32 %v170, %v171
    %v173 = vrot.slane %v172, 4
    %v174 = vmax.f32 %v172, %v173
    %v175 = vrot.slane %v174, 2
    %v176 = vmax.f32 %v174, %v175
    %v177 = vrot.slane %v176, 1
    %v178 = vmax.f32 %v176, %v177
    %v179 = vsel %vm169, %v167, -inf
    %v180 = vsel %vm169, %v168, -inf
    %v181 = vmax.f32 %v179, %v180
    %v182 = vrot.slane %v181, 4
    %v183 = vmax.f32 %v181, %v182
    %v184 = vrot.slane %v183, 2
    %v185 = vmax.f32 %v183, %v184
    %v186 = vrot.slane %v185, 1
    %v187 = vmax.f32 %v185, %v186
    %vm188 = vcmask 1040384
    %v189 = vsel %vm188, %v178, %v187
    %v190 = vld [vmem:[%s4] sm:$0xff]
    %v191 = vld [vmem:[%s4 + $0x8] sm:$0xff]
    %v192 = vld [vmem:[%s4 + $0x10] sm:$0xff]
    %v193 = vld [vmem:[%s5] sm:$0x1]
    %v195 = vlaneseq
    %v196 = vshrl.u32 %v195, 7
    %v197 = vsub.s32 0, %v196
    %v198 = vrot.slane %v193, %v197
    %v201 = vsel %vm169, %v189, 0
    %203 = vmatprep.subr.mxu0 0.0
    %204 = vmatpush1.msra.mxu0 0.0
    %205 = vmatprep.subr.mxu0 0.0
    %206 = vmatpush1.msra.mxu0 0.0
    %207 = vmatprep.subr.mxu0 0.0
    %208 = vmatpush1.msra.mxu0 0.0
    %209 = vmatprep.subr.mxu0 0.0
    %210 = vmatpush1.msra.mxu0 0.0
    %211 = vmatprep.subr.mxu0 0.0
    %212 = vmatpush1.msra.mxu0 0.0
    %213 = vmatprep.subr.mxu0 0.0
    %214 = vmatpush1.msra.mxu0 0.0
    %215 = vmatprep.subr.mxu0 0.0
    %216 = vmatpush1.msra.mxu0 0.0
    %217 = vmatprep.subr.mxu0 0.0
    %218 = vmatpush1.msra.mxu0 0.0
    %219 = vmatprep.subr.mxu0 0.0
    %220 = vmatpush1.msra.mxu0 0.0
    %221 = vmatprep.subr.mxu0 0.0
    %222 = vmatpush1.msra.mxu0 0.0
    %223 = vmatprep.subr.mxu0 0.0
    %224 = vmatpush1.msra.mxu0 0.0
    %225 = vmatprep.subr.mxu0 0.0
    %226 = vmatpush1.msra.mxu0 0.0
    %227 = vmatprep.subr.mxu0 0.0
    %228 = vmatpush1.msra.mxu0 0.0
    %229 = vmatprep.subr.mxu0 0.0
    %230 = vmatpush1.msra.mxu0 %v192
    %231 = vmatprep.subr.mxu0 0.0
    %232 = vmatpush1.msra.mxu0 %v191
    %233 = vmatprep.subr.mxu0 0.0
    %234 = vmatpush1.msra.mxu0 %v190
    %235 = vmatprep.subr.mxu0 0.0
    %236 = vmatpush2.msra.mxu0 0.0
    %237 = vmatprep.subr.mxu0 0.0
    %238 = vmatpush2.msra.mxu0 0.0
    %239 = vmatprep.subr.mxu0 0.0
    %240 = vmatpush2.msra.mxu0 0.0
    %241 = vmatprep.subr.mxu0 0.0
    %242 = vmatpush2.msra.mxu0 0.0
    %243 = vmatprep.subr.mxu0 0.0
    %244 = vmatpush2.msra.mxu0 0.0
    %245 = vmatprep.subr.mxu0 0.0
    %246 = vmatpush2.msra.mxu0 0.0
    %247 = vmatprep.subr.mxu0 0.0
    %248 = vmatpush2.msra.mxu0 0.0
    %249 = vmatprep.subr.mxu0 0.0
    %250 = vmatpush2.msra.mxu0 0.0
    %251 = vmatprep.subr.mxu0 0.0
    %252 = vmatpush2.msra.mxu0 0.0
    %253 = vmatprep.subr.mxu0 0.0
    %254 = vmatpush2.msra.mxu0 0.0
    %255 = vmatprep.subr.mxu0 0.0
    %256 = vmatpush2.msra.mxu0 0.0
    %257 = vmatprep.subr.mxu0 0.0
    %258 = vmatpush2.msra.mxu0 0.0
    %259 = vmatprep.subr.mxu0 0.0
    %260 = vmatpush2.msra.mxu0 0.0
    %261 = vmatprep.subr.mxu0 0.0
    %262 = vmatpush2.msra.mxu0 0.0
    %263 = vmatprep.subr.mxu0 0.0
    %264 = vmatpush2.msra.mxu0 0.0
    %265 = vmatprep.subr.mxu0 0.0
    %266 = vmatpush2.msra.mxu0 0.0
    %267 = vmatprep.mubr.f32.mxu0 0.0
    %268 = vmatmul.mubr.f32.gmra.mxu0 %v201
    %v269 = vpop.f32.mrf.mxu0
    %v270 = vadd.f32 %v198, %v269
    %v271 = vpop.f32.mrf.mxu0
    %272 = vdwg.mxu0
    %vm273 = vcmask 25600
    %v274 = vsel %vm273, %v270, -inf
    %275 = vmax.xlane.f32.xlu0 %v274
    %v276 = vpop.xlane.xlu0 %275
    %v277 = vsub.f32 %v270, %v276
    %v278 = vmul.f32 %v277, 1.442695
    %v279 = vpow.pop %v278
    %v280 = vsel %vm273, %v279, 0.0
    %281 = vadd.xlane.f32.xlu0 %v280
    %v282 = vpop.xlane.xlu0 %281
    %v283 = vrcp.pop %v282
    %v284 = vmul.f32 %v279, %v283
    %285 = vst.msk [vmem:[#allocation2] sm:$0x3] %vm273, %v284
    // Predicated region
    $region26: #{cnn_forward.1} parent=1 // pred_check
      _
    $region27: #{cnn_forward.1} parent=1 // pred_check_branch
      %287 = sbr.rel (0) target = $region29
    $region28: #{cnn_forward.1} parent=1 // pred_region
      %s289 = ssub.s32 32, 32
      %290 = vsyncadd [#allocation3], %s289
      %s292 = sshll.u32 [#allocation2], 4
      %s293 = int_to_ptr.vmem [resolvable:$true] %s292
      %295 = dma.vmem_to_hbm [thread:$0]  %s293, 32, %s6, [#allocation3]
    $region29: #{cnn_forward.1} parent=1 // pred_fallthru
      _
    // Predicated region
    $region30: #{cnn_forward.1} parent=1 // pred_check
      _
    $region31: #{cnn_forward.1} parent=1 // pred_check_branch
      %297 = sbr.rel (0) target = $region33
    $region32: #{cnn_forward.1} parent=1 // pred_region
      %298 = dma.done [#allocation3], 32
    $region33: #{cnn_forward.1} parent=1 // pred_fallthru
      _
    %299 = vsyncpa [#allocation3], 1

</llo_original>
